<compile_context>
chip_gen: v7x
topology: tpu7x:2x2x1
jax: 0.10.0
libtpu: 0.0.40
codegen_flags: <defaults>
</compile_context>

<pallas_src>
import functools

import jax
import jax.numpy as jnp
from jax.experimental import pallas as pl
from jax.experimental.pallas import tpu as pltpu


def _round_up(x, m):
    return ((x + m - 1) // m) * m


def _device_kind():
    try:
        return jax.devices()[0].device_kind.lower()
    except Exception:
        return ""


def _alignment_loss_kernel(x_ref, out_ref, *, gamma, feat_d, tile_b, steps,
                           valid_b, compute_dtype):
    c = pl.program_id(0)   # core-split axis ("parallel")
    j = pl.program_id(1)   # batch-tile axis ("arbitrary", accumulating)

    @pl.when(j == 0)
    def _():
        out_ref[...] = jnp.zeros_like(out_ref)

    # Slice the four packed operands straight from the ref (no full-tile f32
    # copy); upcast per operand only when required by the chip / dtype.
    def _operand(k):
        return x_ref[:, pl.ds(k * feat_d, feat_d)].astype(compute_dtype)

    l = _operand(0)
    r = _operand(1)
    fl = _operand(2)
    fr = _operand(3)

    def _l1(a, b):
        # sub/abs in compute_dtype (bf16 on bf16-native chips), f32 accumulate.
        return jnp.sum(jnp.abs(a - b).astype(jnp.float32), axis=-1, keepdims=True)

    d_lr = _l1(l, r)
    d_lfr = _l1(l, fr)
    d_flr = _l1(fl, r)

    t = d_lr + jnp.float32(gamma)                 # shared term, computed once
    loss = jnp.maximum(t - d_lfr, 0.0) + jnp.maximum(t - d_flr, 0.0)

    row0 = (c * steps + j) * tile_b

    # Fast path: tile fully inside the valid batch -> no mask work.
    @pl.when(row0 + tile_b <= valid_b)
    def _():
        out_ref[...] += jnp.sum(loss)

    # Ragged tail tile: mask padded rows (select, so garbage can't leak NaN).
    @pl.when(row0 + tile_b > valid_b)
    def _():
        rows = row0 + jax.lax.broadcasted_iota(jnp.int32, (tile_b, 1), 0)
        out_ref[...] += jnp.sum(jnp.where(rows < valid_b, loss, 0.0))


def alignment_loss(outfeature, trainset, *, gamma, batch_size):
    """Pallas implementation of Alignment_loss.forward.

    outfeature: (N, D) float array of node embeddings
    trainset:   (B, 4) int array of row indices [l, r, fl, fr] into outfeature
    Returns: (1, 1) float32 loss (sum over batch of triplet margins / batch_size)
    """
    h = jnp.asarray(outfeature)
    if not jnp.issubdtype(h.dtype, jnp.floating):
        h = h.astype(jnp.float32)
    idx = jnp.asarray(trainset, dtype=jnp.int32)

    B = idx.shape[0]
    D = h.shape[1]
    itemsize = jnp.dtype(h.dtype).itemsize
    row_bytes = 4 * D * itemsize                  # one packed example row in HBM
    sublane = 8 * max(1, 4 // itemsize)           # f32: 8, bf16: 16, 8-bit: 32

    kind = _device_kind()
    is_v7 = ("v7" in kind) or ("tpu7" in kind)
    bf16_native = not any(v in kind for v in ("v2", "v3", "v4", "v5"))
    num_splits = 2 if is_v7 else 1                # one output slice per TensorCore

    vmem_cap = (64 << 20) if is_v7 else (128 << 20)
    try:
        vmem_cap = int(pltpu.get_tpu_info().vmem_capacity_bytes)
    except Exception:
        pass
    # Larger VMEM share on 128-MiB chips (v5e/v6e), conservative on 64-MiB v7x.
    budget = vmem_cap // 3 if vmem_cap >= (96 << 20) else vmem_cap // 4

    # Per-row VMEM cost: double-buffered input stream + f32 intermediates
    # (intermediate lane dim is padded to 128 by the vreg layout).
    interm_per_row = 10 * _round_up(D, 128) * 4
    tile_b = budget // (2 * row_bytes + interm_per_row)
    tile_b = max(sublane, (tile_b // sublane) * sublane)
    rows_per_split = pl.cdiv(B, num_splits)
    tile_b = min(tile_b, max(sublane, _round_up(rows_per_split, sublane)))

    tiles = pl.cdiv(B, tile_b)
    steps = pl.cdiv(tiles, num_splits)
    b_pad = num_splits * steps * tile_b

    # Pad the *tiny* index array instead of the packed feature stream: padded
    # rows gather row 0 of `h` (valid data) and are masked inside the kernel,
    # so no full-size HBM copy is spent on batch padding.
    if b_pad != B:
        idx = jnp.pad(idx, ((0, b_pad - B), (0, 0)))

    # Gather + pack the four operands contiguously: (b_pad, 4*D).  The block's
    # last dim equals the full array dim, so no lane padding is shipped.
    packed = jnp.take(h, idx, axis=0).reshape(b_pad, 4 * D)
    # TODO(synk): fuse the row gather into the kernel (scalar-prefetched idx +
    # per-row DMA, or a VMEM-resident `h` with an in-kernel gather) to remove
    # the HBM write+read of the materialized packed stream.

    compute_dtype = h.dtype if (h.dtype == jnp.bfloat16 and bf16_native) else jnp.float32

    kernel = functools.partial(
        _alignment_loss_kernel,
        gamma=float(gamma), feat_d=D, tile_b=tile_b, steps=steps,
        valid_b=B, compute_dtype=compute_dtype,
    )

    need = 2 * tile_b * row_bytes + tile_b * interm_per_row + (8 << 20)
    vmem_limit = int(min(max(need, 32 << 20), vmem_cap * 3 // 4))

    partials = pl.pallas_call(
        kernel,
        out_shape=jax.ShapeDtypeStruct((num_splits, 8, 128), jnp.float32),
        grid_spec=pltpu.PrefetchScalarGridSpec(
            num_scalar_prefetch=0,
            grid=(num_splits, steps),
            in_specs=[pl.BlockSpec((tile_b, 4 * D),
                                   lambda c, j: (c * steps + j, 0))],
            out_specs=pl.BlockSpec((1, 8, 128), lambda c, j: (c, 0, 0)),
        ),
        compiler_params=pltpu.CompilerParams(
            dimension_semantics=("parallel", "arbitrary"),
            vmem_limit_bytes=vmem_limit,
        ),
    )(packed)

    total = jnp.sum(partials[:, 0, 0])
    return (total / jnp.float32(batch_size)).reshape(1, 1)


def alignment_loss_ref(outfeature, trainset, *, gamma, batch_size):
    h = jnp.asarray(outfeature, dtype=jnp.float32)
    idx = jnp.asarray(trainset, dtype=jnp.int32)
    l, r, fl, fr = (h[idx[:, 0]], h[idx[:, 1]], h[idx[:, 2]], h[idx[:, 3]])

    def l1(a, b):
        return jnp.sum(jnp.abs(a - b), axis=-1, keepdims=True)

    loss = (jax.nn.relu(gamma + l1(l, r) - l1(l, fr))
            + jax.nn.relu(gamma + l1(l, r) - l1(fl, r)))
    return jnp.sum(loss, axis=0, keepdims=True) / batch_size


if __name__ == "__main__":
    key = jax.random.PRNGKey(0)
    k_h, k_idx = jax.random.split(key)

    N, D = 16, 32        # number of node embeddings, feature dim
    B = 16               # number of training quadruples (batch)
    gamma = 0.5

    h = jax.random.normal(k_h, (N, D), dtype=jnp.float32)
    trainset = jax.random.randint(k_idx, (B, 4), 0, N, dtype=jnp.int32)

    out = alignment_loss(h, trainset, gamma=gamma, batch_size=B)
    out = jax.block_until_ready(out)

    ref = alignment_loss_ref(h, trainset, gamma=gamma, batch_size=B)
    assert out.shape == (1, 1)
    assert jnp.allclose(out, ref, atol=1e-5, rtol=1e-5), (out, ref)

    print("KERNEL_OK")
</pallas_src>

<mosaic_0001>
module attributes {stable_mosaic.version = 11 : i64} {
  func.func @_alignment_loss_kernel(%arg0: i32, %arg1: i32, %arg2: memref<16x128xf32, #tpu.memory_space<vmem>>, %arg3: memref<1x8x128xf32, #tpu.memory_space<vmem>>) attributes {dimension_semantics = [#tpu.dimension_semantics<parallel>, #tpu.dimension_semantics<arbitrary>], iteration_bounds = array<i64: 1, 1>, scalar_prefetch = 0 : i64, scratch_operands = 0 : i64, tpu.core_type = #tpu.core_type<tc>, window_params = [{transform_indices = @transform_0, window_bounds = array<i64: 16, 128>}, {transform_indices = @transform_1, window_bounds = array<i64: 1, 8, 128>}]} {
    %c0_i32 = arith.constant 0 : i32
    %0 = arith.cmpi eq, %arg1, %c0_i32 : i32
    %1 = arith.extui %0 : i1 to i32
    %c0_i32_0 = arith.constant 0 : i32
    %2 = arith.cmpi ne, %1, %c0_i32_0 : i32
    scf.if %2 {
      %cst_16 = arith.constant 0.000000e+00 : f32
      %39 = vector.broadcast %cst_16 : f32 to vector<1x8x128xf32>
      %c0_17 = arith.constant 0 : index
      %c0_18 = arith.constant 0 : index
      %c0_19 = arith.constant 0 : index
      %40 = vector.load %arg3[%c0_17, %c0_18, %c0_19] : memref<1x8x128xf32, #tpu.memory_space<vmem>>, vector<1x8x128xf32>
      tpu.vector_store %arg3[%c0_17, %c0_18, %c0_19], %39 {strides = array<i32>} : memref<1x8x128xf32, #tpu.memory_space<vmem>>, vector<1x8x128xf32>,
    } else {
    }
    %c0 = arith.constant 0 : index
    %c0_1 = arith.constant 0 : index
    %3 = vector.load %arg2[%c0, %c0_1] : memref<16x128xf32, #tpu.memory_space<vmem>>, vector<16x32xf32>
    %c0_2 = arith.constant 0 : index
    %c32 = arith.constant 32 : index
    %4 = vector.load %arg2[%c0_2, %c32] : memref<16x128xf32, #tpu.memory_space<vmem>>, vector<16x32xf32>
    %c0_3 = arith.constant 0 : index
    %c64 = arith.constant 64 : index
    %5 = vector.load %arg2[%c0_3, %c64] : memref<16x128xf32, #tpu.memory_space<vmem>>, vector<16x32xf32>
    %c0_4 = arith.constant 0 : index
    %c96 = arith.constant 96 : index
    %6 = vector.load %arg2[%c0_4, %c96] : memref<16x128xf32, #tpu.memory_space<vmem>>, vector<16x32xf32>
    %7 = arith.subf %3, %4 : vector<16x32xf32>
    %8 = math.absf %7 : vector<16x32xf32>
    %cst = arith.constant dense<0.000000e+00> : vector<16xf32>
    %9 = vector.multi_reduction <add>, %8, %cst [1] : vector<16x32xf32> to vector<16xf32>
    %10 = vector.shape_cast %9 : vector<16xf32> to vector<16x1xf32>
    %11 = arith.subf %3, %6 : vector<16x32xf32>
    %12 = math.absf %11 : vector<16x32xf32>
    %cst_5 = arith.constant dense<0.000000e+00> : vector<16xf32>
    %13 = vector.multi_reduction <add>, %12, %cst_5 [1] : vector<16x32xf32> to vector<16xf32>
    %14 = vector.shape_cast %13 : vector<16xf32> to vector<16x1xf32>
    %15 = arith.subf %5, %4 : vector<16x32xf32>
    %16 = math.absf %15 : vector<16x32xf32>
    %cst_6 = arith.constant dense<0.000000e+00> : vector<16xf32>
    %17 = vector.multi_reduction <add>, %16, %cst_6 [1] : vector<16x32xf32> to vector<16xf32>
    %18 = vector.shape_cast %17 : vector<16xf32> to vector<16x1xf32>
    %cst_7 = arith.constant 5.000000e-01 : f32
    %19 = vector.broadcast %cst_7 : f32 to vector<16x1xf32>
    %20 = arith.addf %10, %19 : vector<16x1xf32>
    %21 = arith.subf %20, %14 : vector<16x1xf32>
    %cst_8 = arith.constant 0.000000e+00 : f32
    %22 = vector.broadcast %cst_8 : f32 to vector<16x1xf32>
    %23 = arith.maximumf %21, %22 : vector<16x1xf32>
    %24 = arith.subf %20, %18 : vector<16x1xf32>
    %cst_9 = arith.constant 0.000000e+00 : f32
    %25 = vector.broadcast %cst_9 : f32 to vector<16x1xf32>
    %26 = arith.maximumf %24, %25 : vector<16x1xf32>
    %27 = arith.addf %23, %26 : vector<16x1xf32>
    %c1_i32 = arith.constant 1 : i32
    %28 = arith.muli %arg0, %c1_i32 : i32
    %29 = arith.addi %28, %arg1 : i32
    %c16_i32 = arith.constant 16 : i32
    %30 = arith.muli %29, %c16_i32 : i32
    %c16_i32_10 = arith.constant 16 : i32
    %31 = arith.addi %30, %c16_i32_10 : i32
    %c16_i32_11 = arith.constant 16 : i32
    %32 = arith.cmpi sle, %31, %c16_i32_11 : i32
    %33 = arith.extui %32 : i1 to i32
    %c0_i32_12 = arith.constant 0 : i32
    %34 = arith.cmpi ne, %33, %c0_i32_12 : i32
    scf.if %34 {
      %c0_16 = arith.constant 0 : index
      %c0_17 = arith.constant 0 : index
      %c0_18 = arith.constant 0 : index
      %39 = vector.load %arg3[%c0_16, %c0_17, %c0_18] : memref<1x8x128xf32, #tpu.memory_space<vmem>>, vector<1x8x128xf32>
      %40 = vector.shape_cast %27 : vector<16x1xf32> to vector<1x16x1xf32>
      %cst_19 = arith.constant dense<0.000000e+00> : vector<1xf32>
      %41 = vector.multi_reduction <add>, %40, %cst_19 [1, 2] : vector<1x16x1xf32> to vector<1xf32>
      %42 = vector.shape_cast %41 : vector<1xf32> to vector<1x1x1xf32>
      %43 = vector.extract %42[0, 0, 0] : f32 from vector<1x1x1xf32>
      %44 = vector.broadcast %43 : f32 to vector<1x8x128xf32>
      %45 = arith.addf %39, %44 : vector<1x8x128xf32>
      %c0_20 = arith.constant 0 : index
      %c0_21 = arith.constant 0 : index
      %c0_22 = arith.constant 0 : index
      %46 = vector.load %arg3[%c0_20, %c0_21, %c0_22] : memref<1x8x128xf32, #tpu.memory_space<vmem>>, vector<1x8x128xf32>
      tpu.vector_store %arg3[%c0_20, %c0_21, %c0_22], %45 {strides = array<i32>} : memref<1x8x128xf32, #tpu.memory_space<vmem>>, vector<1x8x128xf32>,
    } else {
    }
    %c16_i32_13 = arith.constant 16 : i32
    %35 = arith.addi %30, %c16_i32_13 : i32
    %c16_i32_14 = arith.constant 16 : i32
    %36 = arith.cmpi sgt, %35, %c16_i32_14 : i32
    %37 = arith.extui %36 : i1 to i32
    %c0_i32_15 = arith.constant 0 : i32
    %38 = arith.cmpi ne, %37, %c0_i32_15 : i32
    scf.if %38 {
      %39 = tpu.iota {dimensions = array<i32: 0>} : vector<16x1xi32>
      %40 = vector.broadcast %30 : i32 to vector<16x1xi32>
      %41 = arith.addi %40, %39 : vector<16x1xi32>
      %c0_16 = arith.constant 0 : index
      %c0_17 = arith.constant 0 : index
      %c0_18 = arith.constant 0 : index
      %42 = vector.load %arg3[%c0_16, %c0_17, %c0_18] : memref<1x8x128xf32, #tpu.memory_space<vmem>>, vector<1x8x128xf32>
      %c16_i32_19 = arith.constant 16 : i32
      %43 = vector.broadcast %c16_i32_19 : i32 to vector<16x1xi32>
      %44 = arith.cmpi slt, %41, %43 : vector<16x1xi32>
      %cst_20 = arith.constant 0.000000e+00 : f32
      %45 = vector.broadcast %cst_20 : f32 to vector<16x1xf32>
      %46 = arith.select %44, %27, %45 : vector<16x1xi1>, vector<16x1xf32>
      %47 = vector.shape_cast %46 : vector<16x1xf32> to vector<1x16x1xf32>
      %cst_21 = arith.constant dense<0.000000e+00> : vector<1xf32>
      %48 = vector.multi_reduction <add>, %47, %cst_21 [1, 2] : vector<1x16x1xf32> to vector<1xf32>
      %49 = vector.shape_cast %48 : vector<1xf32> to vector<1x1x1xf32>
      %50 = vector.extract %49[0, 0, 0] : f32 from vector<1x1x1xf32>
      %51 = vector.broadcast %50 : f32 to vector<1x8x128xf32>
      %52 = arith.addf %42, %51 : vector<1x8x128xf32>
      %c0_22 = arith.constant 0 : index
      %c0_23 = arith.constant 0 : index
      %c0_24 = arith.constant 0 : index
      %53 = vector.load %arg3[%c0_22, %c0_23, %c0_24] : memref<1x8x128xf32, #tpu.memory_space<vmem>>, vector<1x8x128xf32>
      tpu.vector_store %arg3[%c0_22, %c0_23, %c0_24], %52 {strides = array<i32>} : memref<1x8x128xf32, #tpu.memory_space<vmem>>, vector<1x8x128xf32>,
    } else {
    }
    return
  }
  func.func @transform_0(%arg0: i32, %arg1: i32) -> (i32, i32) {
    %c1_i32 = arith.constant 1 : i32
    %0 = arith.muli %arg0, %c1_i32 : i32
    %1 = arith.addi %0, %arg1 : i32
    %c0_i32 = arith.constant 0 : i32
    %c0_i32_0 = arith.constant 0 : i32
    return %1, %c0_i32 : i32, i32
  }
  func.func @transform_1(%arg0: i32, %arg1: i32) -> (i32, i32, i32) {
    %c0_i32 = arith.constant 0 : i32
    %c0_i32_0 = arith.constant 0 : i32
    %c0_i32_1 = arith.constant 0 : i32
    return %arg0, %c0_i32, %c0_i32_0 : i32, i32, i32
  }
}

</mosaic_0001>

<llo_original>
// kernel: tpu_custom_call.1
$region0: #{tpu_custom_call.1}
  #allocation0 [shape = 'u32[]', space=smem, size = 0x4, offset = 0x4, fixed_abs, tag = 'smem constant byte address 0x4 - core index']
  #allocation1 [shape = 'u32[144,128]{1,0:T(1,128)}', space=vmem, size = 0x12000, scoped, tag = 'internal scratch']
  %s0 = inlined_call_operand.hbm [shape: f32[16,128], index: 0, kind: input, shape index: {}]
  %s1 = inlined_call_operand.hbm [shape: f32[1,8,128], index: 1, kind: output, shape index: {}]
  %s2 = sld [smem:[#allocation0]]
  $region30: #{tpu_custom_call.1} parent=0
    _
  %s4 = ssub.s32 1, %s2
  %s5 = scalar_select 0, %s4, %s2
  $region1: #{tpu_custom_call.1} parent=0
    #allocation2 [shape = 'u8[8192]{0}', space=vmem, size = 0x2000, scoped, tag = 'input window, operand 0, single buffered']
    #allocation3 [shape = 's32[1]{0}', space=sflag, size = 0x4, scoped, tag = 'scoped memory for tpu_custom_call.1']
    #allocation4 [shape = 's32[1]{0}', space=sflag, size = 0x4, scoped, tag = 'scoped memory for tpu_custom_call.1']
    #allocation5 [shape = 'u8[4096]{0}', space=vmem, size = 0x1000, scoped, tag = 'output window, operand 0, single buffered']
    %6 = vsyncpa [#allocation3], 0
    %7 = vsyncpa [#allocation4], 0
    // Predicated region
    $region2: #{tpu_custom_call.1} parent=1 // pred_check
      _
    $region3: #{tpu_custom_call.1} parent=1 // pred_check_branch
      %9 = sbr.rel (0) target = $region5
    $region4: #{tpu_custom_call.1} parent=1 // pred_region
      %s10 = sadd.s32 0, 0
      %s11 = smul.u32 2, %s10
      %s13 = ssub.s32 256, 256
      %14 = vsyncadd [#allocation3], %s13
      %s15 = smul.addr %s11, 128
      %s16 = scalar_lea.hbm %s0, %s15
      %s17 = sshll.u32 [#allocation2], 4
      %s18 = int_to_ptr.vmem [resolvable:$true] %s17
      %23 = dma.hbm_to_vmem [thread:$0]  %s16, 256, %s18, [#allocation3], 128, 128, 8
    $region5: #{tpu_custom_call.1} parent=1 // pred_fallthru
      _
    // Predicated region
    $region6: #{tpu_custom_call.1} parent=1 // pred_check
      _
    $region7: #{tpu_custom_call.1} parent=1 // pred_check_branch
      %25 = sbr.rel (0) target = $region9
    $region8: #{tpu_custom_call.1} parent=1 // pred_region
      %26 = dma.done [#allocation3], 256
    $region9: #{tpu_custom_call.1} parent=1 // pred_fallthru
      _
    %s27 = sadd.s32 0, 0
    %s28 = smul.u32 2, %s27
    %p29 = scmp.eq.s32.totalorder 0, 0
    // Predicated region
    $region10: #{tpu_custom_call.1} parent=1 // pred_check
      %p30 = pneg %p29
    $region11: #{tpu_custom_call.1} parent=1 // pred_check_branch
      %32 = sbr.rel (%p30) target = $region13
    $region12: #{tpu_custom_call.1} parent=1 // pred_region
      %33 = vst [vmem:[#allocation5] sm:$0xff] 0.0
    $region13: #{tpu_custom_call.1} parent=1 // pred_fallthru
      _
    %v34 = vld [vmem:[#allocation2] sm:$0xff]
    %v35 = vld [vmem:[#allocation2 + $0x8] sm:$0xff]
    %38 = vrot.lane.b32.xlu0 %v34, 96
    %v39 = vpop.permute.xlu0 %38
    %40 = vrot.lane.b32.xlu0 %v35, 96
    %v41 = vpop.permute.xlu0 %40
    %v44 = vsub.f32 %v34, %v39
    %v45 = vsub.f32 %v35, %v41
    %v46 = vand.u32 2147483647, %v44
    %v47 = vand.u32 2147483647, %v45
    %vm48 = vcmask 261120
    %v49 = vsel %vm48, %v46, 0.0
    %50 = vadd.xlane.f32.xlu0 %v49
    %v51 = vpop.xlane.xlu0 %50
    %v52 = vsel %vm48, %v47, 0.0
    %53 = vadd.xlane.f32.xlu0 %v52
    %v54 = vpop.xlane.xlu0 %53
    %55 = vrot.lane.b32.xlu0 %v34, 32
    %v56 = vpop.permute.xlu0 %55
    %57 = vrot.lane.b32.xlu0 %v35, 32
    %v58 = vpop.permute.xlu0 %57
    %v61 = vsub.f32 %v34, %v56
    %v62 = vsub.f32 %v35, %v58
    %v63 = vand.u32 2147483647, %v61
    %v64 = vand.u32 2147483647, %v62
    %v65 = vsel %vm48, %v63, 0.0
    %66 = vadd.xlane.f32.xlu0 %v65
    %v67 = vpop.xlane.xlu0 %66
    %v68 = vsel %vm48, %v64, 0.0
    %69 = vadd.xlane.f32.xlu0 %v68
    %v70 = vpop.xlane.xlu0 %69
    %73 = vrot.lane.b32.xlu0 %v63, 64
    %v74 = vpop.permute.xlu0 %73
    %75 = vrot.lane.b32.xlu0 %v64, 64
    %v76 = vpop.permute.xlu0 %75
    %v79 = vsel %vm48, %v74, 0.0
    %80 = vadd.xlane.f32.xlu0 %v79
    %v81 = vpop.xlane.xlu0 %80
    %v82 = vsel %vm48, %v76, 0.0
    %83 = vadd.xlane.f32.xlu0 %v82
    %v84 = vpop.xlane.xlu0 %83
    %v85 = vadd.f32 %v51, 0.5
    %v86 = vadd.f32 %v54, 0.5
    %v87 = vsub.f32 %v85, %v67
    %v88 = vsub.f32 %v86, %v70
    %v89 = vmax.f32 %v87, 0.0
    %v90 = vmax.f32 %v88, 0.0
    %v91 = vsub.f32 %v85, %v81
    %v92 = vsub.f32 %v86, %v84
    %v93 = vmax.f32 %v91, 0.0
    %v94 = vmax.f32 %v92, 0.0
    %v95 = vadd.f32 %v89, %v93
    %v96 = vadd.f32 %v90, %v94
    %s97 = sadd.s32 0, 0
    %s98 = smul.u32 %s97, 16
    %s99 = sadd.s32 %s98, 16
    %p100 = scmp.le.s32.totalorder %s99, 16
    // Predicated region
    $region14: #{tpu_custom_call.1} parent=1 // pred_check
      %p101 = pneg %p100
    $region15: #{tpu_custom_call.1} parent=1 // pred_check_branch
      %103 = sbr.rel (%p101) target = $region17
    $region16: #{tpu_custom_call.1} parent=1 // pred_region
      %v104 = vld [vmem:[#allocation5] sm:$0xff]
      %vm105 = vcmask 7168
      %v106 = vsel %vm105, %v95, 0.0
      %v107 = vsel %vm105, %v96, 0.0
      %v108 = vadd.f32 %v106, %v107
      %109 = vadd.xlane.f32.xlu0 %v108
      %v110 = vpop.xlane.xlu0 %109
      %v111 = vrot.slane %v110, 4
      %v112 = vadd.f32 %v110, %v111
      %v113 = vrot.slane %v112, 2
      %v114 = vadd.f32 %v112, %v113
      %v115 = vrot.slane %v114, 1
      %v116 = vadd.f32 %v114, %v115
      %s117 = vtos %v116
      %v118 = vstv %s117
      %v119 = vadd.f32 %v104, %v118
      %120 = vst [vmem:[#allocation5] sm:$0xff] %v119
    $region17: #{tpu_custom_call.1} parent=1 // pred_fallthru
      _
    %p121 = scmp.gt.s32.totalorder %s99, 16
    // Predicated region
    $region18: #{tpu_custom_call.1} parent=1 // pred_check
      %p122 = pneg %p121
    $region19: #{tpu_custom_call.1} parent=1 // pred_check_branch
      %124 = sbr.rel (%p122) target = $region21
    $region20: #{tpu_custom_call.1} parent=1 // pred_region
      %v125 = vlaneseq
      %v126 = vshrl.u32 %v125, 7
      %v127 = vadd.s32 %v126, 8
      %v128 = vstv %s98
      %v129 = vadd.s32 %v128, %v126
      %v130 = vadd.s32 %v128, %v127
      %v131 = vld [vmem:[#allocation5] sm:$0xff]
      %vm132 = vcmp.lt.s32.totalorder %v129, 16
      %vm133 = vcmp.lt.s32.totalorder %v130, 16
      %v134 = vsel %vm132, %v95, 0.0
      %v135 = vsel %vm133, %v96, 0.0
      %vm136 = vcmask 7168
      %v137 = vsel %vm136, %v134, 0.0
      %v138 = vsel %vm136, %v135, 0.0
      %v139 = vadd.f32 %v137, %v138
      %140 = vadd.xlane.f32.xlu0 %v139
      %v141 = vpop.xlane.xlu0 %140
      %v142 = vrot.slane %v141, 4
      %v143 = vadd.f32 %v141, %v142
      %v144 = vrot.slane %v143, 2
      %v145 = vadd.f32 %v143, %v144
      %v146 = vrot.slane %v145, 1
      %v147 = vadd.f32 %v145, %v146
      %s148 = vtos %v147
      %v149 = vstv %s148
      %v150 = vadd.f32 %v131, %v149
      %151 = vst [vmem:[#allocation5] sm:$0xff] %v150
    $region21: #{tpu_custom_call.1} parent=1 // pred_fallthru
      _
    // Predicated region
    $region22: #{tpu_custom_call.1} parent=1 // pred_check
      _
    $region23: #{tpu_custom_call.1} parent=1 // pred_check_branch
      %153 = sbr.rel (0) target = $region25
    $region24: #{tpu_custom_call.1} parent=1 // pred_region
      %s155 = ssub.s32 128, 128
      %156 = vsyncadd [#allocation4], %s155
      %s158 = sshll.u32 [#allocation5], 4
      %s159 = int_to_ptr.vmem [resolvable:$true] %s158
      %161 = dma.vmem_to_hbm [thread:$0]  %s159, 128, %s1, [#allocation4]
    $region25: #{tpu_custom_call.1} parent=1 // pred_fallthru
      _
    // Predicated region
    $region26: #{tpu_custom_call.1} parent=1 // pred_check
      _
    $region27: #{tpu_custom_call.1} parent=1 // pred_check_branch
      %163 = sbr.rel (0) target = $region29
    $region28: #{tpu_custom_call.1} parent=1 // pred_region
      %164 = dma.done [#allocation4], 128
    $region29: #{tpu_custom_call.1} parent=1 // pred_fallthru
      _
    %165 = vsyncpa [#allocation3], 1
    %166 = vsyncpa [#allocation4], 1

</llo_original>
